<compile_context>
chip_gen: v5e
topology: v5e:2x2
jax: 0.10.0
libtpu: 0.0.40
codegen_flags: <defaults>
</compile_context>

<pallas_src>
import functools

import jax
import jax.numpy as jnp
from jax import lax
from jax.experimental import pallas as pl
from jax.experimental.pallas import tpu as pltpu

HIDDEN = 128      # matches nn.Linear(input_dim, 128) / (128, 128)
K_PAD = 16        # input_dim (9) padded to a sublane multiple
OUT_PAD = 128     # output_dim (9) padded to a full lane tile (lane-dense stores)


def dqn_kernel(x_ref, w1_ref, b1_ref, w2_ref, b2_ref, w3_ref, b3_ref,
               q_ref, act_ref, *, output_dim):
    x = x_ref[...]

    # fc1 + relu
    h1 = jnp.dot(x, w1_ref[...], preferred_element_type=jnp.float32) + b1_ref[...]
    h1 = jnp.maximum(h1, 0.0)

    # fc2 + relu
    h2 = jnp.dot(h1, w2_ref[...], preferred_element_type=jnp.float32) + b2_ref[...]
    h2 = jnp.maximum(h2, 0.0)

    # fc3 (no activation) — q_ref is lane-dense (OUT_PAD = 128 columns, unmasked vst)
    q = jnp.dot(h2, w3_ref[...], preferred_element_type=jnp.float32) + b3_ref[...]
    q_ref[...] = q

    # Fused greedy-action epilogue.
    # Padded Q columns (>= output_dim) are masked to -inf so a padded 0.0 can never
    # win the argmax when all real Q-values are negative.
    lane = lax.broadcasted_iota(jnp.int32, q.shape, 1)
    q_masked = jnp.where(lane < output_dim, q, -jnp.inf)
    q_max = jnp.max(q_masked, axis=-1, keepdims=True)
    # First (lowest) index achieving the row max == jnp.argmax tie-breaking.
    act_ref[...] = jnp.min(
        jnp.where(q_masked == q_max, lane, jnp.int32(OUT_PAD)),
        axis=-1, keepdims=True)


def _batch_tiling(batch):
    """Pick (b_pad, tm): single block for small batches, 256-row tiles otherwise."""
    b_pad = max(8, ((batch + 7) // 8) * 8)
    if b_pad <= 256:
        # One block -> grid=(1,): no per-step pipeline overhead for tiny batches.
        return b_pad, b_pad
    tm = 256
    b_pad = ((b_pad + tm - 1) // tm) * tm
    # grid >= 2 "parallel" steps so v7x's two TensorCores both get work.
    return b_pad, tm


def pad_input(x, b_pad=None, k_pad=K_PAD):
    """One-time pad of x to [b_pad, K_PAD].

    Store the result (e.g. in the replay buffer) so the per-call forward never
    re-pads / re-copies the batch.
    """
    batch, in_dim = x.shape
    if b_pad is None:
        b_pad, _ = _batch_tiling(batch)
    return jnp.zeros((b_pad, k_pad), x.dtype).at[:batch, :in_dim].set(x)


def dqn_forward(x, params, output_dim):
    """Forward pass.

    x: ideally pre-padded [b_pad, K_PAD] f32 (see pad_input); a logical
       [B, input_dim] array is padded here as a fallback.
    Returns (q, action):
      q:      [b_pad, OUT_PAD] f32 — logical Q-values live in [:, :output_dim].
              (Consumers index rows/lanes; no post-kernel column slice is done here.)
      action: [b_pad, 1] int32 — fused argmax over the real output_dim Q columns.
    Rows >= the logical batch size are padding and must be ignored by consumers.
    """
    batch = x.shape[0]
    k_pad = params["w1"].shape[0]
    out_pad = params["w3"].shape[1]

    b_pad, tm = _batch_tiling(batch)
    if x.shape != (b_pad, k_pad):
        # Fallback only — hot paths should pass x pre-padded (pad_input).
        x = pad_input(x, b_pad, k_pad)

    grid = (b_pad // tm,)

    flops = 2 * b_pad * (k_pad * HIDDEN + HIDDEN * HIDDEN + HIDDEN * out_pad)
    bytes_accessed = 4 * (
        b_pad * k_pad                                   # x
        + k_pad * HIDDEN + HIDDEN                       # w1, b1
        + HIDDEN * HIDDEN + HIDDEN                      # w2, b2
        + HIDDEN * out_pad + out_pad                    # w3, b3
        + b_pad * out_pad                               # q out
        + b_pad                                         # action out
    )

    q, act = pl.pallas_call(
        functools.partial(dqn_kernel, output_dim=output_dim),
        out_shape=(
            jax.ShapeDtypeStruct((b_pad, out_pad), jnp.float32),
            jax.ShapeDtypeStruct((b_pad, 1), jnp.int32),
        ),
        grid_spec=pltpu.PrefetchScalarGridSpec(
            num_scalar_prefetch=0,
            grid=grid,
            in_specs=[
                # x: one batch tile per grid step
                pl.BlockSpec((tm, k_pad), lambda i: (i, 0)),
                # Weights / biases: full-resident VMEM blocks, constant index_map ->
                # never re-DMA'd across steps.
                # TODO(synk): pipeline_mode=pl.Buffered(1) on these would drop their
                # unused second buffer (~132 KiB); negligible at HIDDEN=128.
                pl.BlockSpec((k_pad, HIDDEN), lambda i: (0, 0)),
                pl.BlockSpec((1, HIDDEN), lambda i: (0, 0)),
                pl.BlockSpec((HIDDEN, HIDDEN), lambda i: (0, 0)),
                pl.BlockSpec((1, HIDDEN), lambda i: (0, 0)),
                pl.BlockSpec((HIDDEN, out_pad), lambda i: (0, 0)),
                pl.BlockSpec((1, out_pad), lambda i: (0, 0)),
            ],
            out_specs=[
                pl.BlockSpec((tm, out_pad), lambda i: (i, 0)),
                pl.BlockSpec((tm, 1), lambda i: (i, 0)),
            ],
        ),
        compiler_params=pltpu.CompilerParams(
            # Batch tiles are independent -> megacore-splittable on v7x.
            dimension_semantics=("parallel",),
        ),
        cost_estimate=pl.CostEstimate(
            flops=flops, transcendentals=0, bytes_accessed=bytes_accessed),
    )(x, params["w1"], params["b1"], params["w2"], params["b2"],
      params["w3"], params["b3"])

    return q, act


def init_params(key, input_dim, output_dim, hidden=HIDDEN):
    """PyTorch-style uniform(+/- 1/sqrt(fan_in)) init, stored pre-padded.

    Weights are [in, out] (transposed relative to nn.Linear.weight). fc1's input
    rows beyond input_dim and fc3's output columns beyond output_dim are zero,
    so the padded kernel computes exactly the same function.
    """
    ks = jax.random.split(key, 6)

    def lin(kw, kb, fan_in, fan_out):
        bound = 1.0 / jnp.sqrt(jnp.float32(fan_in))
        w = jax.random.uniform(kw, (fan_in, fan_out), jnp.float32, -bound, bound)
        b = jax.random.uniform(kb, (1, fan_out), jnp.float32, -bound, bound)
        return w, b

    w1, b1 = lin(ks[0], ks[1], input_dim, hidden)
    w2, b2 = lin(ks[2], ks[3], hidden, hidden)
    w3, b3 = lin(ks[4], ks[5], hidden, output_dim)

    # Zero-pad to static, aligned shapes.
    w1p = jnp.zeros((K_PAD, hidden), jnp.float32).at[:input_dim, :].set(w1)
    w3p = jnp.zeros((hidden, OUT_PAD), jnp.float32).at[:, :output_dim].set(w3)
    b3p = jnp.zeros((1, OUT_PAD), jnp.float32).at[:, :output_dim].set(b3)

    return {"w1": w1p, "b1": b1, "w2": w2, "b2": b2, "w3": w3p, "b3": b3p}


if __name__ == "__main__":
    # TicTacToe: 3x3 board flattened -> input_dim = 9, one Q-value per cell -> output_dim = 9.
    B, input_dim, output_dim = 16, 9, 9

    key = jax.random.PRNGKey(0)
    k_params, k_x = jax.random.split(key)

    params = init_params(k_params, input_dim, output_dim)
    x = jax.random.normal(k_x, (B, input_dim), jnp.float32)

    # Pre-pad once (as the replay buffer would store it) — the forward never re-pads.
    xp = pad_input(x)

    q, act = dqn_forward(xp, params, output_dim)
    q = jax.block_until_ready(q)
    act = jax.block_until_ready(act)

    # Reference in plain JAX using the *logical* (unpadded) weights.
    def ref(x, p):
        w1 = p["w1"][:input_dim, :]
        w3 = p["w3"][:, :output_dim]
        b3 = p["b3"][:, :output_dim]
        h1 = jnp.maximum(x @ w1 + p["b1"], 0.0)
        h2 = jnp.maximum(h1 @ p["w2"] + p["b2"], 0.0)
        return h2 @ w3 + b3

    expected = ref(x, params)

    # Consumer-side indexing of the padded block (verification only, not a hot path).
    q_logical = q[:B, :output_dim]
    assert q.shape == (16, OUT_PAD) and act.shape == (16, 1)
    assert jnp.allclose(q_logical, expected, atol=1e-5, rtol=1e-5)
    assert jnp.array_equal(act[:B, 0], jnp.argmax(expected, axis=-1))

    print("KERNEL_OK")
</pallas_src>

<mosaic_0001>
module attributes {stable_mosaic.version = 11 : i64} {
  func.func @dqn_kernel(%arg0: i32, %arg1: memref<16x16xf32, #tpu.memory_space<vmem>>, %arg2: memref<16x128xf32, #tpu.memory_space<vmem>>, %arg3: memref<1x128xf32, #tpu.memory_space<vmem>>, %arg4: memref<128x128xf32, #tpu.memory_space<vmem>>, %arg5: memref<1x128xf32, #tpu.memory_space<vmem>>, %arg6: memref<128x128xf32, #tpu.memory_space<vmem>>, %arg7: memref<1x128xf32, #tpu.memory_space<vmem>>, %arg8: memref<16x128xf32, #tpu.memory_space<vmem>>, %arg9: memref<16x1xi32, #tpu.memory_space<vmem>>) attributes {dimension_semantics = [#tpu.dimension_semantics<parallel>], iteration_bounds = array<i64: 1>, scalar_prefetch = 0 : i64, scratch_operands = 0 : i64, tpu.core_type = #tpu.core_type<tc>, window_params = [{transform_indices = @transform_0, window_bounds = array<i64: 16, 16>}, {pipeline_mode = #tpu.pipeline_mode<synchronous>, transform_indices = @transform_1, window_bounds = array<i64: 16, 128>}, {pipeline_mode = #tpu.pipeline_mode<synchronous>, transform_indices = @transform_2, window_bounds = array<i64: 1, 128>}, {pipeline_mode = #tpu.pipeline_mode<synchronous>, transform_indices = @transform_3, window_bounds = array<i64: 128, 128>}, {pipeline_mode = #tpu.pipeline_mode<synchronous>, transform_indices = @transform_4, window_bounds = array<i64: 1, 128>}, {pipeline_mode = #tpu.pipeline_mode<synchronous>, transform_indices = @transform_5, window_bounds = array<i64: 128, 128>}, {pipeline_mode = #tpu.pipeline_mode<synchronous>, transform_indices = @transform_6, window_bounds = array<i64: 1, 128>}, {transform_indices = @transform_7, window_bounds = array<i64: 16, 128>}, {transform_indices = @transform_8, window_bounds = array<i64: 16, 1>}]} {
    %c0 = arith.constant 0 : index
    %c0_0 = arith.constant 0 : index
    %0 = vector.load %arg1[%c0, %c0_0] : memref<16x16xf32, #tpu.memory_space<vmem>>, vector<16x16xf32>
    %c0_1 = arith.constant 0 : index
    %c0_2 = arith.constant 0 : index
    %1 = vector.load %arg2[%c0_1, %c0_2] : memref<16x128xf32, #tpu.memory_space<vmem>>, vector<16x128xf32>
    %cst = arith.constant dense<0.000000e+00> : vector<16x128xf32>
    %2 = tpu.matmul %0, %1, %cst {dimension_numbers = #tpu.dot_dimension_numbers<[1], [0], [0], [1], [0, 0, 1, 1], [], []>} : vector<16x16xf32>, vector<16x128xf32>, vector<16x128xf32> -> vector<16x128xf32>
    %c0_3 = arith.constant 0 : index
    %c0_4 = arith.constant 0 : index
    %3 = vector.load %arg3[%c0_3, %c0_4] : memref<1x128xf32, #tpu.memory_space<vmem>>, vector<1x128xf32>
    %4 = vector.broadcast %3 : vector<1x128xf32> to vector<16x128xf32>
    %5 = arith.addf %2, %4 : vector<16x128xf32>
    %cst_5 = arith.constant 0.000000e+00 : f32
    %6 = vector.broadcast %cst_5 : f32 to vector<16x128xf32>
    %7 = arith.maximumf %5, %6 : vector<16x128xf32>
    %c0_6 = arith.constant 0 : index
    %c0_7 = arith.constant 0 : index
    %8 = vector.load %arg4[%c0_6, %c0_7] : memref<128x128xf32, #tpu.memory_space<vmem>>, vector<128x128xf32>
    %cst_8 = arith.constant dense<0.000000e+00> : vector<16x128xf32>
    %9 = tpu.matmul %7, %8, %cst_8 {dimension_numbers = #tpu.dot_dimension_numbers<[1], [0], [0], [1], [0, 0, 1, 1], [], []>} : vector<16x128xf32>, vector<128x128xf32>, vector<16x128xf32> -> vector<16x128xf32>
    %c0_9 = arith.constant 0 : index
    %c0_10 = arith.constant 0 : index
    %10 = vector.load %arg5[%c0_9, %c0_10] : memref<1x128xf32, #tpu.memory_space<vmem>>, vector<1x128xf32>
    %11 = vector.broadcast %10 : vector<1x128xf32> to vector<16x128xf32>
    %12 = arith.addf %9, %11 : vector<16x128xf32>
    %cst_11 = arith.constant 0.000000e+00 : f32
    %13 = vector.broadcast %cst_11 : f32 to vector<16x128xf32>
    %14 = arith.maximumf %12, %13 : vector<16x128xf32>
    %c0_12 = arith.constant 0 : index
    %c0_13 = arith.constant 0 : index
    %15 = vector.load %arg6[%c0_12, %c0_13] : memref<128x128xf32, #tpu.memory_space<vmem>>, vector<128x128xf32>
    %cst_14 = arith.constant dense<0.000000e+00> : vector<16x128xf32>
    %16 = tpu.matmul %14, %15, %cst_14 {dimension_numbers = #tpu.dot_dimension_numbers<[1], [0], [0], [1], [0, 0, 1, 1], [], []>} : vector<16x128xf32>, vector<128x128xf32>, vector<16x128xf32> -> vector<16x128xf32>
    %c0_15 = arith.constant 0 : index
    %c0_16 = arith.constant 0 : index
    %17 = vector.load %arg7[%c0_15, %c0_16] : memref<1x128xf32, #tpu.memory_space<vmem>>, vector<1x128xf32>
    %18 = vector.broadcast %17 : vector<1x128xf32> to vector<16x128xf32>
    %19 = arith.addf %16, %18 : vector<16x128xf32>
    %c0_17 = arith.constant 0 : index
    %c0_18 = arith.constant 0 : index
    %20 = vector.load %arg8[%c0_17, %c0_18] : memref<16x128xf32, #tpu.memory_space<vmem>>, vector<16x128xf32>
    tpu.vector_store %arg8[%c0_17, %c0_18], %19 {strides = array<i32>} : memref<16x128xf32, #tpu.memory_space<vmem>>, vector<16x128xf32>,
    %21 = tpu.iota {dimensions = array<i32: 1>} : vector<16x128xi32>
    %c9_i32 = arith.constant 9 : i32
    %22 = vector.broadcast %c9_i32 : i32 to vector<16x128xi32>
    %23 = arith.cmpi slt, %21, %22 : vector<16x128xi32>
    %cst_19 = arith.constant 0xFF800000 : f32
    %24 = vector.broadcast %cst_19 : f32 to vector<16x128xf32>
    %25 = arith.select %23, %19, %24 : vector<16x128xi1>, vector<16x128xf32>
    %cst_20 = arith.constant dense<0xFF800000> : vector<16xf32>
    %26 = vector.multi_reduction <maximumf>, %25, %cst_20 [1] : vector<16x128xf32> to vector<16xf32>
    %27 = vector.shape_cast %26 : vector<16xf32> to vector<16x1xf32>
    %28 = vector.broadcast %27 : vector<16x1xf32> to vector<16x128xf32>
    %29 = arith.cmpf oeq, %25, %28 : vector<16x128xf32>
    %c128_i32 = arith.constant 128 : i32
    %30 = vector.broadcast %c128_i32 : i32 to vector<16x128xi32>
    %31 = arith.select %29, %21, %30 : vector<16x128xi1>, vector<16x128xi32>
    %cst_21 = arith.constant dense<2147483647> : vector<16xi32>
    %32 = vector.multi_reduction <minsi>, %31, %cst_21 [1] : vector<16x128xi32> to vector<16xi32>
    %33 = vector.shape_cast %32 : vector<16xi32> to vector<16x1xi32>
    %c0_22 = arith.constant 0 : index
    %c0_23 = arith.constant 0 : index
    %34 = vector.load %arg9[%c0_22, %c0_23] : memref<16x1xi32, #tpu.memory_space<vmem>>, vector<16x1xi32>
    tpu.vector_store %arg9[%c0_22, %c0_23], %33 {strides = array<i32>} : memref<16x1xi32, #tpu.memory_space<vmem>>, vector<16x1xi32>,
    return
  }
  func.func @transform_0(%arg0: i32) -> (i32, i32) {
    %c0_i32 = arith.constant 0 : i32
    %c0_i32_0 = arith.constant 0 : i32
    return %arg0, %c0_i32 : i32, i32
  }
  func.func @transform_1(%arg0: i32) -> (i32, i32) {
    %c0_i32 = arith.constant 0 : i32
    %c0_i32_0 = arith.constant 0 : i32
    %c0_i32_1 = arith.constant 0 : i32
    return %c0_i32, %c0_i32_0 : i32, i32
  }
  func.func @transform_2(%arg0: i32) -> (i32, i32) {
    %c0_i32 = arith.constant 0 : i32
    %c0_i32_0 = arith.constant 0 : i32
    %c0_i32_1 = arith.constant 0 : i32
    return %c0_i32, %c0_i32_0 : i32, i32
  }
  func.func @transform_3(%arg0: i32) -> (i32, i32) {
    %c0_i32 = arith.constant 0 : i32
    %c0_i32_0 = arith.constant 0 : i32
    %c0_i32_1 = arith.constant 0 : i32
    return %c0_i32, %c0_i32_0 : i32, i32
  }
  func.func @transform_4(%arg0: i32) -> (i32, i32) {
    %c0_i32 = arith.constant 0 : i32
    %c0_i32_0 = arith.constant 0 : i32
    %c0_i32_1 = arith.constant 0 : i32
    return %c0_i32, %c0_i32_0 : i32, i32
  }
  func.func @transform_5(%arg0: i32) -> (i32, i32) {
    %c0_i32 = arith.constant 0 : i32
    %c0_i32_0 = arith.constant 0 : i32
    %c0_i32_1 = arith.constant 0 : i32
    return %c0_i32, %c0_i32_0 : i32, i32
  }
  func.func @transform_6(%arg0: i32) -> (i32, i32) {
    %c0_i32 = arith.constant 0 : i32
    %c0_i32_0 = arith.constant 0 : i32
    %c0_i32_1 = arith.constant 0 : i32
    return %c0_i32, %c0_i32_0 : i32, i32
  }
  func.func @transform_7(%arg0: i32) -> (i32, i32) {
    %c0_i32 = arith.constant 0 : i32
    %c0_i32_0 = arith.constant 0 : i32
    return %arg0, %c0_i32 : i32, i32
  }
  func.func @transform_8(%arg0: i32) -> (i32, i32) {
    %c0_i32 = arith.constant 0 : i32
    %c0_i32_0 = arith.constant 0 : i32
    return %arg0, %c0_i32 : i32, i32
  }
}

</mosaic_0001>

<llo_original>
// kernel: tpu_custom_call.1
$region0: #{tpu_custom_call.1}
  #allocation0 [shape = 'u32[]', space=smem, size = 0x4, offset = 0x4, fixed_abs, tag = 'smem constant byte address 0x4 - core index']
  #allocation1 [shape = 'u32[72,128]{1,0:T(1,128)}', space=vmem, size = 0x9000, scoped, tag = 'internal scratch']
  %s0 = inlined_call_operand.hbm [shape: f32[16,16], index: 0, kind: input, shape index: {}]
  %s1 = inlined_call_operand.hbm [shape: f32[16,128], index: 1, kind: input, shape index: {}]
  %s2 = inlined_call_operand.vmem [shape: f32[1,128], index: 2, kind: input, shape index: {}]
  %s3 = inlined_call_operand.hbm [shape: f32[128,128], index: 3, kind: input, shape index: {}]
  %s4 = inlined_call_operand.vmem [shape: f32[1,128], index: 4, kind: input, shape index: {}]
  %s5 = inlined_call_operand.hbm [shape: f32[128,128], index: 5, kind: input, shape index: {}]
  %s6 = inlined_call_operand.vmem [shape: f32[1,128], index: 6, kind: input, shape index: {}]
  %s7 = inlined_call_operand.hbm [shape: f32[16,128], index: 7, kind: output, shape index: {0}]
  %s8 = inlined_call_operand.vmem [shape: s32[16,1], index: 8, kind: output, shape index: {1}]
  %9 = xla_tuple %s7, %s8
  %s10 = sld [smem:[#allocation0]]
  $region62: #{tpu_custom_call.1} parent=0
    _
  %s12 = ssub.s32 1, %s10
  %s13 = scalar_select 0, %s12, %s10
  $region1: #{tpu_custom_call.1} parent=0
    #allocation2 [shape = 'u8[8192]{0}', space=vmem, size = 0x2000, scoped, tag = 'input window, operand 0, single buffered']
    #allocation3 [shape = 's32[1]{0}', space=sflag, size = 0x4, scoped, tag = 'scoped memory for tpu_custom_call.1']
    #allocation4 [shape = 's32[1]{0}', space=sflag, size = 0x4, scoped, tag = 'scoped memory for tpu_custom_call.1']
    #allocation5 [shape = 'u8[8192]{0}', space=vmem, size = 0x2000, scoped, tag = 'input window, operand 1, single buffered']
    #allocation6 [shape = 's32[1]{0}', space=sflag, size = 0x4, scoped, tag = 'scoped memory for tpu_custom_call.1']
    #allocation7 [shape = 'u8[65536]{0}', space=vmem, size = 0x10000, scoped, tag = 'input window, operand 3, single buffered']
    #allocation8 [shape = 'u8[65536]{0}', space=vmem, size = 0x10000, scoped, tag = 'input window, operand 5, single buffered']
    #allocation9 [shape = 's32[1]{0}', space=sflag, size = 0x4, scoped, tag = 'scoped memory for tpu_custom_call.1']
    #allocation10 [shape = 'u8[8192]{0}', space=vmem, size = 0x2000, scoped, tag = 'output window, operand 0, single buffered']
    %14 = vsyncpa [#allocation3], 0
    %15 = vsyncpa [#allocation6], 0
    %16 = vsyncpa [#allocation9], 0
    %17 = vsyncpa [#allocation4], 0
    // Predicated region
    $region2: #{tpu_custom_call.1} parent=1 // pred_check
      _
    $region3: #{tpu_custom_call.1} parent=1 // pred_check_branch
      %19 = sbr.rel (0) target = $region5
    $region4: #{tpu_custom_call.1} parent=1 // pred_region
      %21 = vsyncadd [#allocation3], 0
      %s22 = sshll.u32 %s0, 4
      %s23 = int_to_ptr.hbm [resolvable:$true] %s22
      %s24 = sshll.u32 [#allocation2], 4
      %s25 = int_to_ptr.vmem [resolvable:$true] %s24
      %30 = dma.hbm_to_vmem [thread:$0]  %s23, 256, %s25, [#allocation3], 128, 128, 8
    $region5: #{tpu_custom_call.1} parent=1 // pred_fallthru
      _
    // Predicated region
    $region6: #{tpu_custom_call.1} parent=1 // pred_check
      _
    $region7: #{tpu_custom_call.1} parent=1 // pred_check_branch
      %32 = sbr.rel (0) target = $region9
    $region8: #{tpu_custom_call.1} parent=1 // pred_region
      %34 = vsyncadd [#allocation6], 0
      %s35 = sshll.u32 %s1, 4
      %s36 = int_to_ptr.hbm [resolvable:$true] %s35
      %s37 = sshll.u32 [#allocation5], 4
      %s38 = int_to_ptr.vmem [resolvable:$true] %s37
      %43 = dma.hbm_to_vmem [thread:$0]  %s36, 256, %s38, [#allocation6], 128, 128, 8
    $region9: #{tpu_custom_call.1} parent=1 // pred_fallthru
      _
    // Predicated region
    $region10: #{tpu_custom_call.1} parent=1 // pred_check
      _
    $region11: #{tpu_custom_call.1} parent=1 // pred_check_branch
      %45 = sbr.rel (0) target = $region13
    $region12: #{tpu_custom_call.1} parent=1 // pred_region
      _
    $region13: #{tpu_custom_call.1} parent=1 // pred_fallthru
      _
    // Predicated region
    $region14: #{tpu_custom_call.1} parent=1 // pred_check
      _
    $region15: #{tpu_custom_call.1} parent=1 // pred_check_branch
      %47 = sbr.rel (0) target = $region17
    $region16: #{tpu_custom_call.1} parent=1 // pred_region
      %49 = vsyncadd [#allocation6], 0
      %s50 = sshll.u32 %s3, 4
      %s51 = int_to_ptr.hbm [resolvable:$true] %s50
      %s52 = sshll.u32 [#allocation7], 4
      %s53 = int_to_ptr.vmem [resolvable:$true] %s52
      %58 = dma.hbm_to_vmem [thread:$0]  %s51, 2048, %s53, [#allocation6], 128, 128, 8
    $region17: #{tpu_custom_call.1} parent=1 // pred_fallthru
      _
    // Predicated region
    $region18: #{tpu_custom_call.1} parent=1 // pred_check
      _
    $region19: #{tpu_custom_call.1} parent=1 // pred_check_branch
      %60 = sbr.rel (0) target = $region21
    $region20: #{tpu_custom_call.1} parent=1 // pred_region
      _
    $region21: #{tpu_custom_call.1} parent=1 // pred_fallthru
      _
    // Predicated region
    $region22: #{tpu_custom_call.1} parent=1 // pred_check
      _
    $region23: #{tpu_custom_call.1} parent=1 // pred_check_branch
      %62 = sbr.rel (0) target = $region25
    $region24: #{tpu_custom_call.1} parent=1 // pred_region
      %64 = vsyncadd [#allocation9], 0
      %s65 = sshll.u32 %s5, 4
      %s66 = int_to_ptr.hbm [resolvable:$true] %s65
      %s67 = sshll.u32 [#allocation8], 4
      %s68 = int_to_ptr.vmem [resolvable:$true] %s67
      %73 = dma.hbm_to_vmem [thread:$0]  %s66, 2048, %s68, [#allocation9], 128, 128, 8
    $region25: #{tpu_custom_call.1} parent=1 // pred_fallthru
      _
    // Predicated region
    $region26: #{tpu_custom_call.1} parent=1 // pred_check
      _
    $region27: #{tpu_custom_call.1} parent=1 // pred_check_branch
      %75 = sbr.rel (0) target = $region29
    $region28: #{tpu_custom_call.1} parent=1 // pred_region
      _
    $region29: #{tpu_custom_call.1} parent=1 // pred_fallthru
      _
    // Predicated region
    $region30: #{tpu_custom_call.1} parent=1 // pred_check
      _
    $region31: #{tpu_custom_call.1} parent=1 // pred_check_branch
      %77 = sbr.rel (0) target = $region33
    $region32: #{tpu_custom_call.1} parent=1 // pred_region
      %79 = dma.done [#allocation3], 256
    $region33: #{tpu_custom_call.1} parent=1 // pred_fallthru
      _
    // Predicated region
    $region34: #{tpu_custom_call.1} parent=1 // pred_check
      _
    $region35: #{tpu_custom_call.1} parent=1 // pred_check_branch
      %81 = sbr.rel (0) target = $region37
    $region36: #{tpu_custom_call.1} parent=1 // pred_region
      %83 = dma.done [#allocation6], 256
    $region37: #{tpu_custom_call.1} parent=1 // pred_fallthru
      _
    // Predicated region
    $region38: #{tpu_custom_call.1} parent=1 // pred_check
      _
    $region39: #{tpu_custom_call.1} parent=1 // pred_check_branch
      %85 = sbr.rel (0) target = $region41
    $region40: #{tpu_custom_call.1} parent=1 // pred_region
      %87 = dma.done [#allocation6], 2048
    $region41: #{tpu_custom_call.1} parent=1 // pred_fallthru
      _
    // Predicated region
    $region42: #{tpu_custom_call.1} parent=1 // pred_check
      _
    $region43: #{tpu_custom_call.1} parent=1 // pred_check_branch
      %89 = sbr.rel (0) target = $region45
    $region44: #{tpu_custom_call.1} parent=1 // pred_region
      %91 = dma.done [#allocation9], 2048
    $region45: #{tpu_custom_call.1} parent=1 // pred_fallthru
      _
    %v92 = vld [vmem:[#allocation2] sm:$0xff]
    %v93 = vld [vmem:[#allocation2 + $0x8] sm:$0xff]
    %v94 = vld [vmem:[#allocation5] sm:$0xff]
    %v95 = vld [vmem:[#allocation5 + $0x8] sm:$0xff]
    %v96 = vld [vmem:[%s2] sm:$0x1]
    %v98 = vperm.slane %v96, 0
    %vm100 = vcmask 130048
    %v102 = vsel %vm100, %v92, 0
    %v105 = vsel %vm100, %v93, 0
    %107 = vmatpush.msra.mxu0 0.0
    %108 = vmatpush.msra.mxu0 0.0
    %109 = vmatpush.msra.mxu0 0.0
    %110 = vmatpush.msra.mxu0 0.0
    %111 = vmatpush.msra.mxu0 0.0
    %112 = vmatpush.msra.mxu0 0.0
    %113 = vmatpush.msra.mxu0 0.0
    %114 = vmatpush.msra.mxu0 0.0
    %115 = vmatpush.msra.mxu0 0.0
    %116 = vmatpush.msra.mxu0 0.0
    %117 = vmatpush.msra.mxu0 0.0
    %118 = vmatpush.msra.mxu0 0.0
    %119 = vmatpush.msra.mxu0 0.0
    %120 = vmatpush.msra.mxu0 0.0
    %121 = vmatpush.msra.mxu0 %v95
    %122 = vmatpush.msra.mxu0 %v94
    %123 = vmatmul.f32.gmra.mxu0 %v102
    %v124 = vpop.f32.mrf.mxu0
    %v125 = vadd.f32 %v98, %v124
    %126 = vmatmul.f32.gmra.mxu0 %v105
    %v127 = vpop.f32.mrf.mxu0
    %v128 = vadd.f32 %v98, %v127
    %129 = vdwg.mxu0
    %v130 = vmax.f32 %v125, 0.0
    %v131 = vmax.f32 %v128, 0.0
    %v132 = vld [vmem:[#allocation7] sm:$0xff]
    %v133 = vld [vmem:[#allocation7 + $0x8] sm:$0xff]
    %v134 = vld [vmem:[#allocation7 + $0x10] sm:$0xff]
    %v135 = vld [vmem:[#allocation7 + $0x18] sm:$0xff]
    %v136 = vld [vmem:[#allocation7 + $0x20] sm:$0xff]
    %v137 = vld [vmem:[#allocation7 + $0x28] sm:$0xff]
    %v138 = vld [vmem:[#allocation7 + $0x30] sm:$0xff]
    %v139 = vld [vmem:[#allocation7 + $0x38] sm:$0xff]
    %v140 = vld [vmem:[#allocation7 + $0x40] sm:$0xff]
    %v141 = vld [vmem:[#allocation7 + $0x48] sm:$0xff]
    %v142 = vld [vmem:[#allocation7 + $0x50] sm:$0xff]
    %v143 = vld [vmem:[#allocation7 + $0x58] sm:$0xff]
    %v144 = vld [vmem:[#allocation7 + $0x60] sm:$0xff]
    %v145 = vld [vmem:[#allocation7 + $0x68] sm:$0xff]
    %v146 = vld [vmem:[#allocation7 + $0x70] sm:$0xff]
    %v147 = vld [vmem:[#allocation7 + $0x78] sm:$0xff]
    %v148 = vld [vmem:[%s4] sm:$0x1]
    %v150 = vperm.slane %v148, 0
    %152 = vmatpush.msra.mxu0 %v147
    %153 = vmatpush.msra.mxu0 %v146
    %154 = vmatpush.msra.mxu0 %v145
    %155 = vmatpush.msra.mxu0 %v144
    %156 = vmatpush.msra.mxu0 %v143
    %157 = vmatpush.msra.mxu0 %v142
    %158 = vmatpush.msra.mxu0 %v141
    %159 = vmatpush.msra.mxu0 %v140
    %160 = vmatpush.msra.mxu0 %v139
    %161 = vmatpush.msra.mxu0 %v138
    %162 = vmatpush.msra.mxu0 %v137
    %163 = vmatpush.msra.mxu0 %v136
    %164 = vmatpush.msra.mxu0 %v135
    %165 = vmatpush.msra.mxu0 %v134
    %166 = vmatpush.msra.mxu0 %v133
    %167 = vmatpush.msra.mxu0 %v132
    %168 = vmatmul.f32.gmra.mxu0 %v130
    %v169 = vpop.f32.mrf.mxu0
    %v170 = vadd.f32 %v150, %v169
    %171 = vmatmul.f32.gmra.mxu0 %v131
    %v172 = vpop.f32.mrf.mxu0
    %v173 = vadd.f32 %v150, %v172
    %174 = vdwg.mxu0
    %v175 = vmax.f32 %v170, 0.0
    %v176 = vmax.f32 %v173, 0.0
    %v177 = vld [vmem:[#allocation8] sm:$0xff]
    %v178 = vld [vmem:[#allocation8 + $0x8] sm:$0xff]
    %v179 = vld [vmem:[#allocation8 + $0x10] sm:$0xff]
    %v180 = vld [vmem:[#allocation8 + $0x18] sm:$0xff]
    %v181 = vld [vmem:[#allocation8 + $0x20] sm:$0xff]
    %v182 = vld [vmem:[#allocation8 + $0x28] sm:$0xff]
    %v183 = vld [vmem:[#allocation8 + $0x30] sm:$0xff]
    %v184 = vld [vmem:[#allocation8 + $0x38] sm:$0xff]
    %v185 = vld [vmem:[#allocation8 + $0x40] sm:$0xff]
    %v186 = vld [vmem:[#allocation8 + $0x48] sm:$0xff]
    %v187 = vld [vmem:[#allocation8 + $0x50] sm:$0xff]
    %v188 = vld [vmem:[#allocation8 + $0x58] sm:$0xff]
    %v189 = vld [vmem:[#allocation8 + $0x60] sm:$0xff]
    %v190 = vld [vmem:[#allocation8 + $0x68] sm:$0xff]
    %v191 = vld [vmem:[#allocation8 + $0x70] sm:$0xff]
    %v192 = vld [vmem:[#allocation8 + $0x78] sm:$0xff]
    %v193 = vld [vmem:[%s6] sm:$0x1]
    %v195 = vperm.slane %v193, 0
    %197 = vmatpush.msra.mxu0 %v192
    %198 = vmatpush.msra.mxu0 %v191
    %199 = vmatpush.msra.mxu0 %v190
    %200 = vmatpush.msra.mxu0 %v189
    %201 = vmatpush.msra.mxu0 %v188
    %202 = vmatpush.msra.mxu0 %v187
    %203 = vmatpush.msra.mxu0 %v186
    %204 = vmatpush.msra.mxu0 %v185
    %205 = vmatpush.msra.mxu0 %v184
    %206 = vmatpush.msra.mxu0 %v183
    %207 = vmatpush.msra.mxu0 %v182
    %208 = vmatpush.msra.mxu0 %v181
    %209 = vmatpush.msra.mxu0 %v180
    %210 = vmatpush.msra.mxu0 %v179
    %211 = vmatpush.msra.mxu0 %v178
    %212 = vmatpush.msra.mxu0 %v177
    %213 = vmatmul.f32.gmra.mxu0 %v175
    %v214 = vpop.f32.mrf.mxu0
    %v215 = vadd.f32 %v195, %v214
    %216 = vmatmul.f32.gmra.mxu0 %v176
    %v217 = vpop.f32.mrf.mxu0
    %v218 = vadd.f32 %v195, %v217
    %219 = vdwg.mxu0
    %220 = vst [vmem:[#allocation10] sm:$0xff] %v215
    %221 = vst [vmem:[#allocation10 + $0x8] sm:$0xff] %v218
    %v222 = vlaneseq
    %v223 = vand.u32 %v222, 127
    %vm224 = vcmp.lt.s32.totalorder %v223, 9
    %v225 = vsel %vm224, %v215, -inf
    %v226 = vsel %vm224, %v218, -inf
    %227 = vmax.xlane.f32.xlu0 %v225
    %v228 = vpop.xlane.xlu0 %227
    %229 = vmax.xlane.f32.xlu0 %v226
    %v230 = vpop.xlane.xlu0 %229
    %vm231 = vcmp.eq.f32.partialorder %v225, %v228
    %vm232 = vcmp.eq.f32.partialorder %v226, %v230
    %v233 = vsel %vm231, %v223, 128
    %v234 = vsel %vm232, %v223, 128
    %v235 = vand.u32 %v233, 65535
    %v236 = vshra.s32 %v233, 16
    %v237 = vcvt.s32.f32 %v235
    %v238 = vcvt.s32.f32 %v236
    %239 = vmin.xlane.f32.xlu0 %v238
    %v240 = vpop.xlane.xlu0 %239
    %vm241 = vcmp.eq.f32.partialorder %v238, %v240
    %v242 = vsel %vm241, %v237, inf
    %243 = vmin.xlane.f32.xlu0 %v242
    %v244 = vpop.xlane.xlu0 %243
    %v245 = vcvt.f32.s32 %v244
    %v246 = vcvt.f32.s32 %v240
    %v247 = vshll.u32 %v246, 16
    %v248 = vadd.s32 %v247, %v245
    %v249 = vand.u32 %v234, 65535
    %v250 = vshra.s32 %v234, 16
    %v251 = vcvt.s32.f32 %v249
    %v252 = vcvt.s32.f32 %v250
    %253 = vmin.xlane.f32.xlu0 %v252
    %v254 = vpop.xlane.xlu0 %253
    %vm255 = vcmp.eq.f32.partialorder %v252, %v254
    %v256 = vsel %vm255, %v251, inf
    %257 = vmin.xlane.f32.xlu0 %v256
    %v258 = vpop.xlane.xlu0 %257
    %v259 = vcvt.f32.s32 %v258
    %v260 = vcvt.f32.s32 %v254
    %v261 = vshll.u32 %v260, 16
    %v262 = vadd.s32 %v261, %v259
    %vm263 = vcmask 7168
    %264 = vst.msk [vmem:[%s8] sm:$0xff] %vm263, %v248
    %265 = vst.msk [vmem:[%s8 + $0x8] sm:$0xff] %vm263, %v262
    // Predicated region
    $region46: #{tpu_custom_call.1} parent=1 // pred_check
      _
    $region47: #{tpu_custom_call.1} parent=1 // pred_check_branch
      %267 = sbr.rel (0) target = $region49
    $region48: #{tpu_custom_call.1} parent=1 // pred_region
      %269 = vsyncadd [#allocation4], 0
      %s270 = sshll.u32 [#allocation10], 4
      %s271 = int_to_ptr.vmem [resolvable:$true] %s270
      %s272 = sshll.u32 %s7, 4
      %s273 = int_to_ptr.hbm [resolvable:$true] %s272
      %278 = dma.vmem_to_hbm [thread:$0]  %s271, 256, %s273, [#allocation4], 128, 128, 8
    $region49: #{tpu_custom_call.1} parent=1 // pred_fallthru
      _
    // Predicated region
    $region50: #{tpu_custom_call.1} parent=1 // pred_check
      _
    $region51: #{tpu_custom_call.1} parent=1 // pred_check_branch
      %280 = sbr.rel (0) target = $region53
    $region52: #{tpu_custom_call.1} parent=1 // pred_region
      _
    $region53: #{tpu_custom_call.1} parent=1 // pred_fallthru
      _
    // Predicated region
    $region54: #{tpu_custom_call.1} parent=1 // pred_check
      _
    $region55: #{tpu_custom_call.1} parent=1 // pred_check_branch
      %282 = sbr.rel (0) target = $region57
    $region56: #{tpu_custom_call.1} parent=1 // pred_region
      %284 = dma.done [#allocation4], 256
    $region57: #{tpu_custom_call.1} parent=1 // pred_fallthru
      _
    // Predicated region
    $region58: #{tpu_custom_call.1} parent=1 // pred_check
      _
    $region59: #{tpu_custom_call.1} parent=1 // pred_check_branch
      %286 = sbr.rel (0) target = $region61
    $region60: #{tpu_custom_call.1} parent=1 // pred_region
      _
    $region61: #{tpu_custom_call.1} parent=1 // pred_fallthru
      _
    %287 = vsyncpa [#allocation3], 1
    %288 = vsyncpa [#allocation6], 1
    %289 = vsyncpa [#allocation9], 1
    %290 = vsyncpa [#allocation4], 1

</llo_original>
